<compile_context>
chip_gen: v7x
topology: tpu7x:2x2x1
jax: 0.10.0
libtpu: 0.0.40
codegen_flags: <defaults>
</compile_context>

<pallas_src>
import jax
import jax.numpy as jnp
from jax.experimental import pallas as pl
from jax.experimental.pallas import tpu as pltpu

LANES = 512                       # lane-dense last dim (multiple of 128) -> unmasked vst
TILE_ROWS = 2048                  # (2048, 512) f32 block = 4 MiB
VMEM_LIMIT_BYTES = 48 * 1024 * 1024  # room for ~16 MiB of double-buffered in+out on every chip


def linear_kernel(x_ref, w_ref, b_ref, o_ref):
    # w_ref / b_ref are SMEM scalars (scalar path) -> no VMEM DMA, no wasted vld.
    w = w_ref[0]
    b = b_ref[0]
    # Exact Linear(1, 1) semantics: y = x * w + b, fully lane-dense VPU work.
    o_ref[...] = x_ref[...] * w + b


@jax.jit
def linear_regression_v2(x, weight, bias):
    """x: (N, 1) f32; weight: (1, 1); bias: (1,)  ->  (N, 1) f32."""
    n, f = x.shape
    assert f == 1
    dtype = x.dtype
    total = n  # one input feature -> N scalar elements

    # Flatten (metadata-only). Pad ONLY up to a multiple of LANES (<= 511 elems);
    # never up to a whole row-tile -- the ragged last row-block is handled by
    # Pallas' masked boundary writeback.
    flat = x.reshape(-1)
    padded = pl.cdiv(total, LANES) * LANES
    needs_pad = padded != total
    if needs_pad:
        flat = jnp.pad(flat, (0, padded - total))
    rows = padded // LANES
    x2d = flat.reshape(rows, LANES)  # metadata-only reshape

    # Block shape: full array when it fits in one tile (always legal, even if
    # rows is not a multiple of 8), otherwise (TILE_ROWS, LANES) with a masked
    # ragged last block via grid = cdiv(rows, TILE_ROWS).
    tr = rows if rows <= TILE_ROWS else TILE_ROWS
    grid = (pl.cdiv(rows, tr),)

    w1 = weight.reshape(1).astype(dtype)
    b1 = bias.reshape(1).astype(dtype)

    cost = pl.CostEstimate(
        flops=2 * padded,                       # one mul + one add per element
        transcendentals=0,
        bytes_accessed=2 * padded * dtype.itemsize,  # read + write, purely mem-bound
    )

    call_kwargs = dict(
        out_shape=jax.ShapeDtypeStruct((rows, LANES), dtype),
        grid=grid,
        in_specs=[
            pl.BlockSpec((tr, LANES), lambda i: (i, 0)),        # streamed, double-buffered
            pl.BlockSpec(memory_space=pltpu.MemorySpace.SMEM),  # scalar weight
            pl.BlockSpec(memory_space=pltpu.MemorySpace.SMEM),  # scalar bias
        ],
        out_specs=pl.BlockSpec((tr, LANES), lambda i: (i, 0)),
        compiler_params=pltpu.CompilerParams(
            dimension_semantics=("parallel",),
            vmem_limit_bytes=VMEM_LIMIT_BYTES,
        ),
        cost_estimate=cost,
    )
    if needs_pad:
        # The padded buffer is a fresh temporary inside this jit: alias it as the
        # output to drop one full-size HBM allocation (blocks are disjoint, so
        # in-place read-then-write per block is hazard-free).
        call_kwargs["input_output_aliases"] = {0: 0}

    out2d = pl.pallas_call(linear_kernel, **call_kwargs)(x2d, w1, b1)

    if needs_pad:
        return out2d.reshape(-1)[:total].reshape(n, 1)
    return out2d.reshape(n, 1)  # metadata-only


if __name__ == "__main__":
    key = jax.random.PRNGKey(0)
    kx, kw, kb, kx2, kx3 = jax.random.split(key, 5)

    # nn.Linear(1, 1) parameters: weight (1, 1), bias (1,), uniform in [-1, 1].
    weight = jax.random.uniform(kw, (1, 1), jnp.float32, minval=-1.0, maxval=1.0)
    bias = jax.random.uniform(kb, (1,), jnp.float32, minval=-1.0, maxval=1.0)

    # Small batch, matching the module's (batch, in_features=1) input.
    x = jax.random.normal(kx, (8, 1), jnp.float32)
    y = jax.block_until_ready(linear_regression_v2(x, weight, bias))
    y_ref = x @ weight.T + bias
    assert y.shape == (8, 1)
    assert jnp.allclose(y, y_ref, atol=1e-6), (y, y_ref)

    # N % LANES == 0 fast path: no pad, no tail slice (pure metadata reshapes).
    x_even = jax.random.normal(kx3, (4096, 1), jnp.float32)
    y_even = jax.block_until_ready(linear_regression_v2(x_even, weight, bias))
    assert y_even.shape == (4096, 1)
    assert jnp.allclose(y_even, x_even @ weight.T + bias, atol=1e-5)

    # Multi-tile + ragged final row-block path (grid > 1, masked boundary writes).
    n_big = TILE_ROWS * LANES + 12345
    xb = jax.random.normal(kx2, (n_big, 1), jnp.float32)
    yb = jax.block_until_ready(linear_regression_v2(xb, weight, bias))
    yb_ref = xb @ weight.T + bias
    assert yb.shape == (n_big, 1)
    assert jnp.allclose(yb, yb_ref, atol=1e-5)

    print("KERNEL_OK")
</pallas_src>

<mosaic_0001>
module attributes {stable_mosaic.version = 11 : i64} {
  func.func @linear_kernel(%arg0: i32, %arg1: memref<1x512xf32, #tpu.memory_space<vmem>>, %arg2: memref<1xf32, #tpu.memory_space<smem>>, %arg3: memref<1xf32, #tpu.memory_space<smem>>, %arg4: memref<1x512xf32, #tpu.memory_space<vmem>>) attributes {dimension_semantics = [#tpu.dimension_semantics<parallel>], iteration_bounds = array<i64: 1>, scalar_prefetch = 0 : i64, scratch_operands = 0 : i64, tpu.core_type = #tpu.core_type<tc>, window_params = [{transform_indices = @transform_0, window_bounds = array<i64: 1, 512>}, {transform_indices = @transform_1, window_bounds = array<i64: 1>}, {transform_indices = @transform_2, window_bounds = array<i64: 1>}, {transform_indices = @transform_3, window_bounds = array<i64: 1, 512>}]} {
    %c0 = arith.constant 0 : index
    %0 = memref.load %arg2[%c0] : memref<1xf32, #tpu.memory_space<smem>>
    %c0_0 = arith.constant 0 : index
    %1 = memref.load %arg3[%c0_0] : memref<1xf32, #tpu.memory_space<smem>>
    %c0_1 = arith.constant 0 : index
    %c0_2 = arith.constant 0 : index
    %2 = vector.load %arg1[%c0_1, %c0_2] : memref<1x512xf32, #tpu.memory_space<vmem>>, vector<1x512xf32>
    %3 = vector.broadcast %0 : f32 to vector<1x512xf32>
    %4 = arith.mulf %2, %3 : vector<1x512xf32>
    %5 = vector.broadcast %1 : f32 to vector<1x512xf32>
    %6 = arith.addf %4, %5 : vector<1x512xf32>
    %c0_3 = arith.constant 0 : index
    %c0_4 = arith.constant 0 : index
    %7 = vector.load %arg4[%c0_3, %c0_4] : memref<1x512xf32, #tpu.memory_space<vmem>>, vector<1x512xf32>
    tpu.vector_store %arg4[%c0_3, %c0_4], %6 {strides = array<i32>} : memref<1x512xf32, #tpu.memory_space<vmem>>, vector<1x512xf32>,
    return
  }
  func.func @transform_0(%arg0: i32) -> (i32, i32) {
    %c0_i32 = arith.constant 0 : i32
    %c0_i32_0 = arith.constant 0 : i32
    return %arg0, %c0_i32 : i32, i32
  }
  func.func @transform_1(%arg0: i32) -> i32 {
    %c0_i32 = arith.constant 0 : i32
    %c0_i32_0 = arith.constant 0 : i32
    return %c0_i32 : i32
  }
  func.func @transform_2(%arg0: i32) -> i32 {
    %c0_i32 = arith.constant 0 : i32
    %c0_i32_0 = arith.constant 0 : i32
    return %c0_i32 : i32
  }
  func.func @transform_3(%arg0: i32) -> (i32, i32) {
    %c0_i32 = arith.constant 0 : i32
    %c0_i32_0 = arith.constant 0 : i32
    return %arg0, %c0_i32 : i32, i32
  }
}

</mosaic_0001>

<llo_original>
// kernel: linear_regression_v2.1
$region0: #{linear_regression_v2.1}
  #allocation0 [shape = 'u32[]', space=smem, size = 0x4, offset = 0x4, fixed_abs, tag = 'smem constant byte address 0x4 - core index']
  #allocation1 [shape = 'u32[144,128]{1,0:T(1,128)}', space=vmem, size = 0x12000, scoped, tag = 'internal scratch']
  #allocation2 [shape = 'f32[1]{0:T(128)S(6)}', space=smem, size = 0x200, scoped, tag = 'scoped memory for linear_regression_v2.1']
  #allocation3 [shape = 'f32[1]{0:T(128)S(6)}', space=smem, size = 0x200, scoped, tag = 'scoped memory for linear_regression_v2.1']
  %s0 = inlined_call_operand.vmem [shape: f32[1,512], index: 0, kind: input, shape index: {}, may-alias: {0,3}]
  %s1 = inlined_call_operand.<no memory space> [shape: f32[1], index: 1, kind: input, shape index: {}]
  %s2 = inlined_call_operand.<no memory space> [shape: f32[1], index: 2, kind: input, shape index: {}]
  %s3 = inlined_call_operand.vmem [shape: f32[1,512], index: 3, kind: output, shape index: {}, may-alias: {0,3}]
  %s4 = sld [smem:[#allocation0]]
  $region22: #{linear_regression_v2.1} parent=0
    _
  %s6 = ssub.s32 1, %s4
  %s7 = scalar_select 0, %s6, %s4
  %8 = sst [smem:[#allocation2]] %s1
  %9 = sst [smem:[#allocation3]] %s2
  // Predicated region
  $region2: #{linear_regression_v2.1} parent=0 // pred_check
    _
  $region3: #{linear_regression_v2.1} parent=0 // pred_check_branch
    %11 = sbr.rel (0) target = $region5
  $region4: #{linear_regression_v2.1} parent=0 // pred_region
    _
  $region5: #{linear_regression_v2.1} parent=0 // pred_fallthru
    _
  // Predicated region
  $region6: #{linear_regression_v2.1} parent=0 // pred_check
    _
  $region7: #{linear_regression_v2.1} parent=0 // pred_check_branch
    %13 = sbr.rel (0) target = $region9
  $region8: #{linear_regression_v2.1} parent=0 // pred_region
    _
  $region9: #{linear_regression_v2.1} parent=0 // pred_fallthru
    _
  // Predicated region
  $region10: #{linear_regression_v2.1} parent=0 // pred_check
    _
  $region11: #{linear_regression_v2.1} parent=0 // pred_check_branch
    %15 = sbr.rel (0) target = $region13
  $region12: #{linear_regression_v2.1} parent=0 // pred_region
    _
  $region13: #{linear_regression_v2.1} parent=0 // pred_fallthru
    _
  %s16 = sld [smem:[#allocation2]]
  %s17 = sld [smem:[#allocation3]]
  %v18 = vld [vmem:[%s0] sm:$0xf]
  %v19 = vstv %s16
  %v20 = vmul.f32 %v18, %v19
  %v21 = vstv %s17
  %v22 = vadd.f32 %v20, %v21
  %v23 = vlaneseq
  %vm24 = vcmp.ge.s32.totalorder %v23, 0
  %vm25 = vcmp.lt.s32.totalorder %v23, 512
  %vm26 = vmand %vm24, %vm25
  %27 = vst.msk [vmem:[%s3] sm:$0xf] %vm26, %v22
  // Predicated region
  $region14: #{linear_regression_v2.1} parent=0 // pred_check
    _
  $region15: #{linear_regression_v2.1} parent=0 // pred_check_branch
    %29 = sbr.rel (0) target = $region17
  $region16: #{linear_regression_v2.1} parent=0 // pred_region
    _
  $region17: #{linear_regression_v2.1} parent=0 // pred_fallthru
    _
  // Predicated region
  $region18: #{linear_regression_v2.1} parent=0 // pred_check
    _
  $region19: #{linear_regression_v2.1} parent=0 // pred_check_branch
    %31 = sbr.rel (0) target = $region21
  $region20: #{linear_regression_v2.1} parent=0 // pred_region
    _
  $region21: #{linear_regression_v2.1} parent=0 // pred_fallthru
    _

</llo_original>
